<compile_context>
chip_gen: v6e
topology: v6e:2x2x1
jax: 0.10.0
libtpu: 0.0.40
codegen_flags: <defaults>
</compile_context>

<pallas_src>
import jax
import jax.numpy as jnp
from jax.experimental import pallas as pl
from jax.experimental.pallas import tpu as pltpu

IN_DIM = 512
HID_DIM = 128
OUT_DIM = 1
TB_MAX = 2048   # 2 inputs x 2 bufs x 2048 x 512 x 4B = 16 MiB (f32); fits the
                # explicit vmem_limit below on all of v5e / v6e / v7x.


def _round_up(x, m):
    return ((x + m - 1) // m) * m


def _similarity_kernel(x1_ref, x2_ref, w1_ref, b1_ref, w2_ref, b2_ref, o_ref):
    # |x1 - x2|                                      (VPU)
    diff = jnp.abs(x1_ref[...] - x2_ref[...])                        # (TB, 512)

    # Linear(512, 128) + ReLU                        (MXU + VPU)
    # Cast LHS to W1's dtype (bf16 by default); accumulate in f32.
    h = jnp.dot(diff.astype(w1_ref.dtype), w1_ref[...],
                preferred_element_type=jnp.float32)
    h = jnp.maximum(h + b1_ref[...], 0.0)                            # (TB, 128)

    # Linear(128, 1) as a lane reduction, not an N=1 MXU matmul (VPU + XLU)
    z = jnp.sum(h * w2_ref[...], axis=-1) + b2_ref[0]                # (TB,)

    # Sigmoid (EUP) + lane-dense store of one (1, 1, TB) row per grid step
    o_ref[...] = jax.nn.sigmoid(z).astype(o_ref.dtype).reshape(o_ref.shape)


def similarity_network(x1, x2, w1, b1, w2, b2, *, tb=None,
                       mxu_dtype=jnp.bfloat16):
    """x1, x2: (B, 512) float32 (or bfloat16). Returns (B, 1) float32.

    Parameter layouts:
      w1: (512, 128)  -- PyTorch fc[0].weight transposed
      b1: (1, 128) or (128,)
      w2: (1, 128)    -- PyTorch fc[2].weight, native (out, in) layout
      b2: scalar / (1,) / (1, 1)

    mxu_dtype: dtype of the layer-1 MXU operands (bf16 default; pass
      jnp.float32 for bit-faithful f32 semantics, ~1e-2 rel logit accuracy
      otherwise).
    """
    B = x1.shape[0]
    assert x1.shape == (B, IN_DIM) and x2.shape == (B, IN_DIM)

    w1_c = jnp.asarray(w1, mxu_dtype).reshape(IN_DIM, HID_DIM)
    b1_row = jnp.asarray(b1, jnp.float32).reshape(1, HID_DIM)
    w2_row = jnp.asarray(w2, jnp.float32).reshape(1, HID_DIM)
    b2_s = jnp.asarray(b2, jnp.float32).reshape(1)

    # Batch tile: multiple of 8 (sublane rule), capped at TB_MAX, and chosen
    # so that num_tiles >= 2 whenever B > 8 (both v7x TensorCores get work).
    if tb is None:
        tb = min(TB_MAX, _round_up(pl.cdiv(max(B, 1), 2), 8))
    tb = max(8, _round_up(int(tb), 8))
    num_tiles = pl.cdiv(B, tb)          # NO padding: last tile may be partial

    # Explicit scoped-VMEM budget: streamed input double-buffers + resident
    # weights + headroom.  (v5e's default is only 16 MiB.)
    in_item = jnp.dtype(x1.dtype).itemsize
    vmem_bytes = 2 * 2 * tb * IN_DIM * in_item                      # x1/x2 bufs
    vmem_bytes += 2 * IN_DIM * HID_DIM * jnp.dtype(mxu_dtype).itemsize  # W1
    vmem_bytes += 4 << 20                                           # misc/headroom
    vmem_bytes = int(min(max(vmem_bytes, 16 << 20), 48 << 20))

    const2 = lambda i: (0, 0)
    out = pl.pallas_call(
        _similarity_kernel,
        out_shape=jax.ShapeDtypeStruct((num_tiles, 1, tb), jnp.float32),
        grid=(num_tiles,),
        in_specs=[
            pl.BlockSpec((tb, IN_DIM), lambda i: (i, 0)),       # x1 tile (streamed)
            pl.BlockSpec((tb, IN_DIM), lambda i: (i, 0)),       # x2 tile (streamed)
            pl.BlockSpec((IN_DIM, HID_DIM), const2),            # W1 (VMEM-resident)
            pl.BlockSpec((1, HID_DIM), const2),                 # b1 (VMEM-resident)
            pl.BlockSpec((1, HID_DIM), const2),                 # W2 row (VMEM-resident)
            pl.BlockSpec(memory_space=pltpu.MemorySpace.SMEM),  # b2 scalar (SMEM)
        ],
        out_specs=pl.BlockSpec((1, 1, tb), lambda i: (i, 0, 0)),
        compiler_params=pltpu.CompilerParams(
            dimension_semantics=("parallel",),
            vmem_limit_bytes=vmem_bytes),
    )(x1, x2, w1_c, b1_row, w2_row, b2_s)

    # Lane-dense slab -> (B, 1); garbage rows from the partial tail tile are
    # row-independent and dropped here.
    return out.reshape(num_tiles * tb, 1)[:B]


def init_params(key):
    """nn.Linear default init: U[-1/sqrt(fan_in), 1/sqrt(fan_in)]."""
    k1, k2, k3, k4 = jax.random.split(key, 4)
    s1 = 1.0 / jnp.sqrt(jnp.float32(IN_DIM))
    s2 = 1.0 / jnp.sqrt(jnp.float32(HID_DIM))
    w1 = jax.random.uniform(k1, (IN_DIM, HID_DIM), jnp.float32, -s1, s1)
    b1 = jax.random.uniform(k2, (1, HID_DIM), jnp.float32, -s1, s1)
    w2 = jax.random.uniform(k3, (1, HID_DIM), jnp.float32, -s2, s2)  # (out, in)
    b2 = jax.random.uniform(k4, (1, 1), jnp.float32, -s2, s2)
    return w1, b1, w2, b2


def reference(x1, x2, w1, b1, w2, b2):
    diff = jnp.abs(x1 - x2)
    h = jnp.maximum(diff @ w1 + b1.reshape(1, -1), 0.0)
    return jax.nn.sigmoid(h @ w2.reshape(1, -1).T + b2.reshape(1, 1))


if __name__ == "__main__":
    key = jax.random.PRNGKey(0)
    kx1, kx2, kp = jax.random.split(key, 3)

    w1, b1, w2, b2 = init_params(kp)

    # Small case, exact f32 MXU path: must match the reference tightly.
    B = 8
    x1 = jax.random.normal(kx1, (B, IN_DIM), jnp.float32)
    x2 = jax.random.normal(kx2, (B, IN_DIM), jnp.float32)
    out_f32 = jax.block_until_ready(
        similarity_network(x1, x2, w1, b1, w2, b2, mxu_dtype=jnp.float32))
    ref = reference(x1, x2, w1, b1, w2, b2)
    assert out_f32.shape == (B, OUT_DIM)
    assert jnp.allclose(out_f32, ref, atol=1e-5, rtol=1e-5)

    # Same case, default bf16 MXU operands (f32 accumulation): looser check.
    out_bf16 = jax.block_until_ready(similarity_network(x1, x2, w1, b1, w2, b2))
    assert out_bf16.shape == (B, OUT_DIM)
    assert jnp.allclose(out_bf16, ref, atol=2e-2, rtol=2e-2)

    # Multi-tile + ragged-batch path (no padding pass): B not a multiple of tb,
    # last grid step processes a partial tile whose tail rows are discarded.
    B2 = 300
    kx3, kx4 = jax.random.split(kx1)
    x1b = jax.random.normal(kx3, (B2, IN_DIM), jnp.float32)
    x2b = jax.random.normal(kx4, (B2, IN_DIM), jnp.float32)
    out2 = jax.block_until_ready(
        similarity_network(x1b, x2b, w1, b1, w2, b2, tb=128))
    ref2 = reference(x1b, x2b, w1, b1, w2, b2)
    assert out2.shape == (B2, OUT_DIM)
    assert jnp.allclose(out2, ref2, atol=2e-2, rtol=2e-2)

    print("KERNEL_OK")
</pallas_src>

<mosaic_0001>
module attributes {stable_mosaic.version = 11 : i64} {
  func.func @_similarity_kernel(%arg0: i32, %arg1: memref<8x512xf32, #tpu.memory_space<vmem>>, %arg2: memref<8x512xf32, #tpu.memory_space<vmem>>, %arg3: memref<512x128xf32, #tpu.memory_space<vmem>>, %arg4: memref<1x128xf32, #tpu.memory_space<vmem>>, %arg5: memref<1x128xf32, #tpu.memory_space<vmem>>, %arg6: memref<1xf32, #tpu.memory_space<smem>>, %arg7: memref<1x1x8xf32, #tpu.memory_space<vmem>>) attributes {dimension_semantics = [#tpu.dimension_semantics<parallel>], iteration_bounds = array<i64: 1>, scalar_prefetch = 0 : i64, scratch_operands = 0 : i64, tpu.core_type = #tpu.core_type<tc>, window_params = [{transform_indices = @transform_0, window_bounds = array<i64: 8, 512>}, {transform_indices = @transform_1, window_bounds = array<i64: 8, 512>}, {pipeline_mode = #tpu.pipeline_mode<synchronous>, transform_indices = @transform_2, window_bounds = array<i64: 512, 128>}, {pipeline_mode = #tpu.pipeline_mode<synchronous>, transform_indices = @transform_3, window_bounds = array<i64: 1, 128>}, {pipeline_mode = #tpu.pipeline_mode<synchronous>, transform_indices = @transform_4, window_bounds = array<i64: 1, 128>}, {transform_indices = @transform_5, window_bounds = array<i64: 1>}, {transform_indices = @transform_6, window_bounds = array<i64: 1, 1, 8>}]} {
    %c0 = arith.constant 0 : index
    %c0_0 = arith.constant 0 : index
    %0 = vector.load %arg1[%c0, %c0_0] : memref<8x512xf32, #tpu.memory_space<vmem>>, vector<8x512xf32>
    %c0_1 = arith.constant 0 : index
    %c0_2 = arith.constant 0 : index
    %1 = vector.load %arg2[%c0_1, %c0_2] : memref<8x512xf32, #tpu.memory_space<vmem>>, vector<8x512xf32>
    %2 = arith.subf %0, %1 : vector<8x512xf32>
    %3 = math.absf %2 : vector<8x512xf32>
    %c0_3 = arith.constant 0 : index
    %c0_4 = arith.constant 0 : index
    %4 = vector.load %arg3[%c0_3, %c0_4] : memref<512x128xf32, #tpu.memory_space<vmem>>, vector<512x128xf32>
    %cst = arith.constant dense<0.000000e+00> : vector<8x128xf32>
    %5 = tpu.matmul %3, %4, %cst {dimension_numbers = #tpu.dot_dimension_numbers<[1], [0], [0], [1], [0, 0, 1, 1], [], []>} : vector<8x512xf32>, vector<512x128xf32>, vector<8x128xf32> -> vector<8x128xf32>
    %c0_5 = arith.constant 0 : index
    %c0_6 = arith.constant 0 : index
    %6 = vector.load %arg4[%c0_5, %c0_6] : memref<1x128xf32, #tpu.memory_space<vmem>>, vector<1x128xf32>
    %7 = vector.broadcast %6 : vector<1x128xf32> to vector<8x128xf32>
    %8 = arith.addf %5, %7 : vector<8x128xf32>
    %cst_7 = arith.constant 0.000000e+00 : f32
    %9 = vector.broadcast %cst_7 : f32 to vector<8x128xf32>
    %10 = arith.maximumf %8, %9 : vector<8x128xf32>
    %c0_8 = arith.constant 0 : index
    %c0_9 = arith.constant 0 : index
    %11 = vector.load %arg5[%c0_8, %c0_9] : memref<1x128xf32, #tpu.memory_space<vmem>>, vector<1x128xf32>
    %12 = vector.broadcast %11 : vector<1x128xf32> to vector<8x128xf32>
    %13 = arith.mulf %10, %12 : vector<8x128xf32>
    %cst_10 = arith.constant dense<0.000000e+00> : vector<8xf32>
    %14 = vector.multi_reduction <add>, %13, %cst_10 [1] : vector<8x128xf32> to vector<8xf32>
    %c0_11 = arith.constant 0 : index
    %15 = memref.load %arg6[%c0_11] : memref<1xf32, #tpu.memory_space<smem>>
    %16 = vector.broadcast %15 : f32 to vector<8xf32>
    %17 = arith.addf %14, %16 : vector<8xf32>
    %18 = arith.negf %17 : vector<8xf32>
    %19 = math.exp %18 : vector<8xf32>
    %cst_12 = arith.constant 1.000000e+00 : f32
    %20 = vector.broadcast %cst_12 : f32 to vector<8xf32>
    %21 = arith.addf %20, %19 : vector<8xf32>
    %22 = arith.divf %20, %21 : vector<8xf32>
    %23 = vector.shape_cast %22 : vector<8xf32> to vector<1x1x8xf32>
    %c0_13 = arith.constant 0 : index
    %c0_14 = arith.constant 0 : index
    %c0_15 = arith.constant 0 : index
    %24 = vector.load %arg7[%c0_13, %c0_14, %c0_15] : memref<1x1x8xf32, #tpu.memory_space<vmem>>, vector<1x1x8xf32>
    tpu.vector_store %arg7[%c0_13, %c0_14, %c0_15], %23 {strides = array<i32>} : memref<1x1x8xf32, #tpu.memory_space<vmem>>, vector<1x1x8xf32>,
    return
  }
  func.func @transform_0(%arg0: i32) -> (i32, i32) {
    %c0_i32 = arith.constant 0 : i32
    %c0_i32_0 = arith.constant 0 : i32
    return %arg0, %c0_i32 : i32, i32
  }
  func.func @transform_1(%arg0: i32) -> (i32, i32) {
    %c0_i32 = arith.constant 0 : i32
    %c0_i32_0 = arith.constant 0 : i32
    return %arg0, %c0_i32 : i32, i32
  }
  func.func @transform_2(%arg0: i32) -> (i32, i32) {
    %c0_i32 = arith.constant 0 : i32
    %c0_i32_0 = arith.constant 0 : i32
    %c0_i32_1 = arith.constant 0 : i32
    return %c0_i32, %c0_i32_0 : i32, i32
  }
  func.func @transform_3(%arg0: i32) -> (i32, i32) {
    %c0_i32 = arith.constant 0 : i32
    %c0_i32_0 = arith.constant 0 : i32
    %c0_i32_1 = arith.constant 0 : i32
    return %c0_i32, %c0_i32_0 : i32, i32
  }
  func.func @transform_4(%arg0: i32) -> (i32, i32) {
    %c0_i32 = arith.constant 0 : i32
    %c0_i32_0 = arith.constant 0 : i32
    %c0_i32_1 = arith.constant 0 : i32
    return %c0_i32, %c0_i32_0 : i32, i32
  }
  func.func @transform_5(%arg0: i32) -> i32 {
    %c0_i32 = arith.constant 0 : i32
    %c0_i32_0 = arith.constant 0 : i32
    return %c0_i32 : i32
  }
  func.func @transform_6(%arg0: i32) -> (i32, i32, i32) {
    %c0_i32 = arith.constant 0 : i32
    %c0_i32_0 = arith.constant 0 : i32
    %c0_i32_1 = arith.constant 0 : i32
    return %arg0, %c0_i32, %c0_i32_0 : i32, i32, i32
  }
}

</mosaic_0001>

<llo_original>
// kernel: tpu_custom_call.1
$region0: #{tpu_custom_call.1}
  #allocation0 [shape = 'u32[]', space=smem, size = 0x4, offset = 0x4, fixed_abs, tag = 'smem constant byte address 0x4 - core index']
  #allocation1 [shape = 'u32[144,128]{1,0:T(1,128)}', space=vmem, size = 0x12000, scoped, tag = 'internal scratch']
  #allocation2 [shape = 'f32[1]{0:T(128)S(6)}', space=smem, size = 0x200, scoped, tag = 'scoped memory for tpu_custom_call.1']
  %s0 = inlined_call_operand.hbm [shape: f32[8,512], index: 0, kind: input, shape index: {}]
  %s1 = inlined_call_operand.hbm [shape: f32[8,512], index: 1, kind: input, shape index: {}]
  %s2 = inlined_call_operand.hbm [shape: f32[512,128], index: 2, kind: input, shape index: {}]
  %s3 = inlined_call_operand.vmem [shape: f32[1,128], index: 3, kind: input, shape index: {}]
  %s4 = inlined_call_operand.vmem [shape: f32[1,128], index: 4, kind: input, shape index: {}]
  %s5 = inlined_call_operand.<no memory space> [shape: f32[1], index: 5, kind: input, shape index: {}]
  %s6 = inlined_call_operand.hbm [shape: f32[1,1,8], index: 6, kind: output, shape index: {}]
  %s7 = sld [smem:[#allocation0]]
  $region46: #{tpu_custom_call.1} parent=0
    _
  %s9 = ssub.s32 1, %s7
  %s10 = scalar_select 0, %s9, %s7
  %11 = sst [smem:[#allocation2]] %s5
  $region1: #{tpu_custom_call.1} parent=0
    #allocation3 [shape = 'u8[16384]{0}', space=vmem, size = 0x4000, scoped, tag = 'input window, operand 0, single buffered']
    #allocation4 [shape = 's32[1]{0}', space=sflag, size = 0x4, scoped, tag = 'scoped memory for tpu_custom_call.1']
    #allocation5 [shape = 's32[1]{0}', space=sflag, size = 0x4, scoped, tag = 'scoped memory for tpu_custom_call.1']
    #allocation6 [shape = 'u8[16384]{0}', space=vmem, size = 0x4000, scoped, tag = 'input window, operand 1, single buffered']
    #allocation7 [shape = 's32[1]{0}', space=sflag, size = 0x4, scoped, tag = 'scoped memory for tpu_custom_call.1']
    #allocation8 [shape = 'u8[262144]{0}', space=vmem, size = 0x40000, scoped, tag = 'input window, operand 2, single buffered']
    #allocation9 [shape = 'u8[512]{0}', space=vmem, size = 0x400, scoped, tag = 'output window, operand 0, single buffered']
    %12 = vsyncpa [#allocation4], 0
    %13 = vsyncpa [#allocation7], 0
    %14 = vsyncpa [#allocation5], 0
    // Predicated region
    $region2: #{tpu_custom_call.1} parent=1 // pred_check
      _
    $region3: #{tpu_custom_call.1} parent=1 // pred_check_branch
      %16 = sbr.rel (0) target = $region5
    $region4: #{tpu_custom_call.1} parent=1 // pred_region
      %s18 = ssub.s32 512, 512
      %19 = vsyncadd [#allocation4], %s18
      %s21 = sshll.u32 [#allocation3], 4
      %s22 = int_to_ptr.vmem [resolvable:$true] %s21
      %24 = dma.hbm_to_vmem [thread:$0]  %s0, 512, %s22, [#allocation4]
    $region5: #{tpu_custom_call.1} parent=1 // pred_fallthru
      _
    // Predicated region
    $region6: #{tpu_custom_call.1} parent=1 // pred_check
      _
    $region7: #{tpu_custom_call.1} parent=1 // pred_check_branch
      %26 = sbr.rel (0) target = $region9
    $region8: #{tpu_custom_call.1} parent=1 // pred_region
      %s28 = ssub.s32 512, 512
      %29 = vsyncadd [#allocation7], %s28
      %s31 = sshll.u32 [#allocation6], 4
      %s32 = int_to_ptr.vmem [resolvable:$true] %s31
      %34 = dma.hbm_to_vmem [thread:$0]  %s1, 512, %s32, [#allocation7]
    $region9: #{tpu_custom_call.1} parent=1 // pred_fallthru
      _
    // Predicated region
    $region10: #{tpu_custom_call.1} parent=1 // pred_check
      _
    $region11: #{tpu_custom_call.1} parent=1 // pred_check_branch
      %36 = sbr.rel (0) target = $region13
    $region12: #{tpu_custom_call.1} parent=1 // pred_region
      %s38 = ssub.s32 8192, 8192
      %39 = vsyncadd [#allocation7], %s38
      %s40 = sshll.u32 [#allocation8], 4
      %s41 = int_to_ptr.vmem [resolvable:$true] %s40
      %46 = dma.hbm_to_vmem [thread:$0]  %s2, 8192, %s41, [#allocation7], 128, 128, 8
    $region13: #{tpu_custom_call.1} parent=1 // pred_fallthru
      _
    // Predicated region
    $region14: #{tpu_custom_call.1} parent=1 // pred_check
      _
    $region15: #{tpu_custom_call.1} parent=1 // pred_check_branch
      %48 = sbr.rel (0) target = $region17
    $region16: #{tpu_custom_call.1} parent=1 // pred_region
      _
    $region17: #{tpu_custom_call.1} parent=1 // pred_fallthru
      _
    // Predicated region
    $region18: #{tpu_custom_call.1} parent=1 // pred_check
      _
    $region19: #{tpu_custom_call.1} parent=1 // pred_check_branch
      %50 = sbr.rel (0) target = $region21
    $region20: #{tpu_custom_call.1} parent=1 // pred_region
      _
    $region21: #{tpu_custom_call.1} parent=1 // pred_fallthru
      _
    // Predicated region
    $region22: #{tpu_custom_call.1} parent=1 // pred_check
      _
    $region23: #{tpu_custom_call.1} parent=1 // pred_check_branch
      %52 = sbr.rel (0) target = $region25
    $region24: #{tpu_custom_call.1} parent=1 // pred_region
      _
    $region25: #{tpu_custom_call.1} parent=1 // pred_fallthru
      _
    // Predicated region
    $region26: #{tpu_custom_call.1} parent=1 // pred_check
      _
    $region27: #{tpu_custom_call.1} parent=1 // pred_check_branch
      %54 = sbr.rel (0) target = $region29
    $region28: #{tpu_custom_call.1} parent=1 // pred_region
      %55 = dma.done [#allocation4], 512
    $region29: #{tpu_custom_call.1} parent=1 // pred_fallthru
      _
    // Predicated region
    $region30: #{tpu_custom_call.1} parent=1 // pred_check
      _
    $region31: #{tpu_custom_call.1} parent=1 // pred_check_branch
      %57 = sbr.rel (0) target = $region33
    $region32: #{tpu_custom_call.1} parent=1 // pred_region
      %58 = dma.done [#allocation7], 512
    $region33: #{tpu_custom_call.1} parent=1 // pred_fallthru
      _
    // Predicated region
    $region34: #{tpu_custom_call.1} parent=1 // pred_check
      _
    $region35: #{tpu_custom_call.1} parent=1 // pred_check_branch
      %60 = sbr.rel (0) target = $region37
    $region36: #{tpu_custom_call.1} parent=1 // pred_region
      %61 = dma.done [#allocation7], 8192
    $region37: #{tpu_custom_call.1} parent=1 // pred_fallthru
      _
    %v62 = vld [vmem:[#allocation3] sm:$0xff]
    %v63 = vld [vmem:[#allocation3 + $0x8] sm:$0xff]
    %v64 = vld [vmem:[#allocation3 + $0x10] sm:$0xff]
    %v65 = vld [vmem:[#allocation3 + $0x18] sm:$0xff]
    %v66 = vld [vmem:[#allocation6] sm:$0xff]
    %v67 = vld [vmem:[#allocation6 + $0x8] sm:$0xff]
    %v68 = vld [vmem:[#allocation6 + $0x10] sm:$0xff]
    %v69 = vld [vmem:[#allocation6 + $0x18] sm:$0xff]
    %v70 = vsub.f32 %v62, %v66
    %v71 = vsub.f32 %v63, %v67
    %v72 = vsub.f32 %v64, %v68
    %v73 = vsub.f32 %v65, %v69
    %v74 = vand.u32 2147483647, %v70
    %v75 = vand.u32 2147483647, %v71
    %v76 = vand.u32 2147483647, %v72
    %v77 = vand.u32 2147483647, %v73
    %v78 = vld [vmem:[#allocation8] sm:$0xff]
    %v79 = vld [vmem:[#allocation8 + $0x8] sm:$0xff]
    %v80 = vld [vmem:[#allocation8 + $0x10] sm:$0xff]
    %v81 = vld [vmem:[#allocation8 + $0x18] sm:$0xff]
    %v82 = vld [vmem:[#allocation8 + $0x20] sm:$0xff]
    %v83 = vld [vmem:[#allocation8 + $0x28] sm:$0xff]
    %v84 = vld [vmem:[#allocation8 + $0x30] sm:$0xff]
    %v85 = vld [vmem:[#allocation8 + $0x38] sm:$0xff]
    %v86 = vld [vmem:[#allocation8 + $0x40] sm:$0xff]
    %v87 = vld [vmem:[#allocation8 + $0x48] sm:$0xff]
    %v88 = vld [vmem:[#allocation8 + $0x50] sm:$0xff]
    %v89 = vld [vmem:[#allocation8 + $0x58] sm:$0xff]
    %v90 = vld [vmem:[#allocation8 + $0x60] sm:$0xff]
    %v91 = vld [vmem:[#allocation8 + $0x68] sm:$0xff]
    %v92 = vld [vmem:[#allocation8 + $0x70] sm:$0xff]
    %v93 = vld [vmem:[#allocation8 + $0x78] sm:$0xff]
    %v94 = vld [vmem:[#allocation8 + $0x80] sm:$0xff]
    %v95 = vld [vmem:[#allocation8 + $0x88] sm:$0xff]
    %v96 = vld [vmem:[#allocation8 + $0x90] sm:$0xff]
    %v97 = vld [vmem:[#allocation8 + $0x98] sm:$0xff]
    %v98 = vld [vmem:[#allocation8 + $0xa0] sm:$0xff]
    %v99 = vld [vmem:[#allocation8 + $0xa8] sm:$0xff]
    %v100 = vld [vmem:[#allocation8 + $0xb0] sm:$0xff]
    %v101 = vld [vmem:[#allocation8 + $0xb8] sm:$0xff]
    %v102 = vld [vmem:[#allocation8 + $0xc0] sm:$0xff]
    %v103 = vld [vmem:[#allocation8 + $0xc8] sm:$0xff]
    %v104 = vld [vmem:[#allocation8 + $0xd0] sm:$0xff]
    %v105 = vld [vmem:[#allocation8 + $0xd8] sm:$0xff]
    %v106 = vld [vmem:[#allocation8 + $0xe0] sm:$0xff]
    %v107 = vld [vmem:[#allocation8 + $0xe8] sm:$0xff]
    %v108 = vld [vmem:[#allocation8 + $0xf0] sm:$0xff]
    %v109 = vld [vmem:[#allocation8 + $0xf8] sm:$0xff]
    %v110 = vld [vmem:[#allocation8 + $0x100] sm:$0xff]
    %v111 = vld [vmem:[#allocation8 + $0x108] sm:$0xff]
    %v112 = vld [vmem:[#allocation8 + $0x110] sm:$0xff]
    %v113 = vld [vmem:[#allocation8 + $0x118] sm:$0xff]
    %v114 = vld [vmem:[#allocation8 + $0x120] sm:$0xff]
    %v115 = vld [vmem:[#allocation8 + $0x128] sm:$0xff]
    %v116 = vld [vmem:[#allocation8 + $0x130] sm:$0xff]
    %v117 = vld [vmem:[#allocation8 + $0x138] sm:$0xff]
    %v118 = vld [vmem:[#allocation8 + $0x140] sm:$0xff]
    %v119 = vld [vmem:[#allocation8 + $0x148] sm:$0xff]
    %v120 = vld [vmem:[#allocation8 + $0x150] sm:$0xff]
    %v121 = vld [vmem:[#allocation8 + $0x158] sm:$0xff]
    %v122 = vld [vmem:[#allocation8 + $0x160] sm:$0xff]
    %v123 = vld [vmem:[#allocation8 + $0x168] sm:$0xff]
    %v124 = vld [vmem:[#allocation8 + $0x170] sm:$0xff]
    %v125 = vld [vmem:[#allocation8 + $0x178] sm:$0xff]
    %v126 = vld [vmem:[#allocation8 + $0x180] sm:$0xff]
    %v127 = vld [vmem:[#allocation8 + $0x188] sm:$0xff]
    %v128 = vld [vmem:[#allocation8 + $0x190] sm:$0xff]
    %v129 = vld [vmem:[#allocation8 + $0x198] sm:$0xff]
    %v130 = vld [vmem:[#allocation8 + $0x1a0] sm:$0xff]
    %v131 = vld [vmem:[#allocation8 + $0x1a8] sm:$0xff]
    %v132 = vld [vmem:[#allocation8 + $0x1b0] sm:$0xff]
    %v133 = vld [vmem:[#allocation8 + $0x1b8] sm:$0xff]
    %v134 = vld [vmem:[#allocation8 + $0x1c0] sm:$0xff]
    %v135 = vld [vmem:[#allocation8 + $0x1c8] sm:$0xff]
    %v136 = vld [vmem:[#allocation8 + $0x1d0] sm:$0xff]
    %v137 = vld [vmem:[#allocation8 + $0x1d8] sm:$0xff]
    %v138 = vld [vmem:[#allocation8 + $0x1e0] sm:$0xff]
    %v139 = vld [vmem:[#allocation8 + $0x1e8] sm:$0xff]
    %v140 = vld [vmem:[#allocation8 + $0x1f0] sm:$0xff]
    %v141 = vld [vmem:[#allocation8 + $0x1f8] sm:$0xff]
    %v142 = vld [vmem:[%s3] sm:$0x1]
    %v144 = vlaneseq
    %v145 = vshrl.u32 %v144, 7
    %v146 = vsub.s32 0, %v145
    %v147 = vrot.slane %v142, %v146
    %149 = vmatprep.subr.mxu0 0.0
    %150 = vmatpush1.msra.mxu0 %v93
    %151 = vmatprep.subr.mxu0 0.0
    %152 = vmatpush1.msra.mxu0 %v92
    %153 = vmatprep.subr.mxu0 0.0
    %154 = vmatpush1.msra.mxu0 %v91
    %155 = vmatprep.subr.mxu0 0.0
    %156 = vmatpush1.msra.mxu0 %v90
    %157 = vmatprep.subr.mxu0 0.0
    %158 = vmatpush1.msra.mxu0 %v89
    %159 = vmatprep.subr.mxu0 0.0
    %160 = vmatpush1.msra.mxu0 %v88
    %161 = vmatprep.subr.mxu0 0.0
    %162 = vmatpush1.msra.mxu0 %v87
    %163 = vmatprep.subr.mxu0 0.0
    %164 = vmatpush1.msra.mxu0 %v86
    %165 = vmatprep.subr.mxu0 0.0
    %166 = vmatpush1.msra.mxu0 %v85
    %167 = vmatprep.subr.mxu0 0.0
    %168 = vmatpush1.msra.mxu0 %v84
    %169 = vmatprep.subr.mxu0 0.0
    %170 = vmatpush1.msra.mxu0 %v83
    %171 = vmatprep.subr.mxu0 0.0
    %172 = vmatpush1.msra.mxu0 %v82
    %173 = vmatprep.subr.mxu0 0.0
    %174 = vmatpush1.msra.mxu0 %v81
    %175 = vmatprep.subr.mxu0 0.0
    %176 = vmatpush1.msra.mxu0 %v80
    %177 = vmatprep.subr.mxu0 0.0
    %178 = vmatpush1.msra.mxu0 %v79
    %179 = vmatprep.subr.mxu0 0.0
    %180 = vmatpush1.msra.mxu0 %v78
    %181 = vmatprep.subr.mxu0 0.0
    %182 = vmatpush2.msra.mxu0 %v109
    %183 = vmatprep.subr.mxu0 0.0
    %184 = vmatpush2.msra.mxu0 %v108
    %185 = vmatprep.subr.mxu0 0.0
    %186 = vmatpush2.msra.mxu0 %v107
    %187 = vmatprep.subr.mxu0 0.0
    %188 = vmatpush2.msra.mxu0 %v106
    %189 = vmatprep.subr.mxu0 0.0
    %190 = vmatpush2.msra.mxu0 %v105
    %191 = vmatprep.subr.mxu0 0.0
    %192 = vmatpush2.msra.mxu0 %v104
    %193 = vmatprep.subr.mxu0 0.0
    %194 = vmatpush2.msra.mxu0 %v103
    %195 = vmatprep.subr.mxu0 0.0
    %196 = vmatpush2.msra.mxu0 %v102
    %197 = vmatprep.subr.mxu0 0.0
    %198 = vmatpush2.msra.mxu0 %v101
    %199 = vmatprep.subr.mxu0 0.0
    %200 = vmatpush2.msra.mxu0 %v100
    %201 = vmatprep.subr.mxu0 0.0
    %202 = vmatpush2.msra.mxu0 %v99
    %203 = vmatprep.subr.mxu0 0.0
    %204 = vmatpush2.msra.mxu0 %v98
    %205 = vmatprep.subr.mxu0 0.0
    %206 = vmatpush2.msra.mxu0 %v97
    %207 = vmatprep.subr.mxu0 0.0
    %208 = vmatpush2.msra.mxu0 %v96
    %209 = vmatprep.subr.mxu0 0.0
    %210 = vmatpush2.msra.mxu0 %v95
    %211 = vmatprep.subr.mxu0 0.0
    %212 = vmatpush2.msra.mxu0 %v94
    %213 = vmatprep.mubr.f32.mxu0 %v75
    %214 = vmatmul.mubr.f32.gmra.mxu0 %v74
    %v215 = vpop.f32.mrf.mxu0
    %v216 = vadd.f32 %v147, %v215
    %v217 = vpop.f32.mrf.mxu0
    %218 = vdwg.mxu0
    %219 = vmatprep.subr.mxu0 0.0
    %220 = vmatpush1.msra.mxu0 %v125
    %221 = vmatprep.subr.mxu0 0.0
    %222 = vmatpush1.msra.mxu0 %v124
    %223 = vmatprep.subr.mxu0 0.0
    %224 = vmatpush1.msra.mxu0 %v123
    %225 = vmatprep.subr.mxu0 0.0
    %226 = vmatpush1.msra.mxu0 %v122
    %227 = vmatprep.subr.mxu0 0.0
    %228 = vmatpush1.msra.mxu0 %v121
    %229 = vmatprep.subr.mxu0 0.0
    %230 = vmatpush1.msra.mxu0 %v120
    %231 = vmatprep.subr.mxu0 0.0
    %232 = vmatpush1.msra.mxu0 %v119
    %233 = vmatprep.subr.mxu0 0.0
    %234 = vmatpush1.msra.mxu0 %v118
    %235 = vmatprep.subr.mxu0 0.0
    %236 = vmatpush1.msra.mxu0 %v117
    %237 = vmatprep.subr.mxu0 0.0
    %238 = vmatpush1.msra.mxu0 %v116
    %239 = vmatprep.subr.mxu0 0.0
    %240 = vmatpush1.msra.mxu0 %v115
    %241 = vmatprep.subr.mxu0 0.0
    %242 = vmatpush1.msra.mxu0 %v114
    %243 = vmatprep.subr.mxu0 0.0
    %244 = vmatpush1.msra.mxu0 %v113
    %245 = vmatprep.subr.mxu0 0.0
    %246 = vmatpush1.msra.mxu0 %v112
    %247 = vmatprep.subr.mxu0 0.0
    %248 = vmatpush1.msra.mxu0 %v111
    %249 = vmatprep.subr.mxu0 0.0
    %250 = vmatpush1.msra.mxu0 %v110
    %251 = vmatprep.subr.mxu0 0.0
    %252 = vmatpush2.msra.mxu0 %v141
    %253 = vmatprep.subr.mxu0 0.0
    %254 = vmatpush2.msra.mxu0 %v140
    %255 = vmatprep.subr.mxu0 0.0
    %256 = vmatpush2.msra.mxu0 %v139
    %257 = vmatprep.subr.mxu0 0.0
    %258 = vmatpush2.msra.mxu0 %v138
    %259 = vmatprep.subr.mxu0 0.0
    %260 = vmatpush2.msra.mxu0 %v137
    %261 = vmatprep.subr.mxu0 0.0
    %262 = vmatpush2.msra.mxu0 %v136
    %263 = vmatprep.subr.mxu0 0.0
    %264 = vmatpush2.msra.mxu0 %v135
    %265 = vmatprep.subr.mxu0 0.0
    %266 = vmatpush2.msra.mxu0 %v134
    %267 = vmatprep.subr.mxu0 0.0
    %268 = vmatpush2.msra.mxu0 %v133
    %269 = vmatprep.subr.mxu0 0.0
    %270 = vmatpush2.msra.mxu0 %v132
    %271 = vmatprep.subr.mxu0 0.0
    %272 = vmatpush2.msra.mxu0 %v131
    %273 = vmatprep.subr.mxu0 0.0
    %274 = vmatpush2.msra.mxu0 %v130
    %275 = vmatprep.subr.mxu0 0.0
    %276 = vmatpush2.msra.mxu0 %v129
    %277 = vmatprep.subr.mxu0 0.0
    %278 = vmatpush2.msra.mxu0 %v128
    %279 = vmatprep.subr.mxu0 0.0
    %280 = vmatpush2.msra.mxu0 %v127
    %281 = vmatprep.subr.mxu0 0.0
    %282 = vmatpush2.msra.mxu0 %v126
    %283 = vmatprep.mubr.f32.mxu0 %v77
    %284 = vmatmul.mubr.f32.gmra.mxu0 %v76
    %v285 = vpop.f32.mrf.mxu0
    %v286 = vadd.f32 %v216, %v285
    %v287 = vpop.f32.mrf.mxu0
    %288 = vdwg.mxu0
    %v289 = vmax.f32 %v286, 0.0
    %v290 = vld [vmem:[%s4] sm:$0x1]
    %v292 = vlaneseq
    %v293 = vshrl.u32 %v292, 7
    %v294 = vsub.s32 0, %v293
    %v295 = vrot.slane %v290, %v294
    %v297 = vmul.f32 %v289, %v295
    %298 = vadd.xlane.f32.xlu0 %v297
    %v299 = vpop.xlane.xlu0 %298
    %s300 = sld [smem:[#allocation2]]
    %v301 = vstv %s300
    %v302 = vadd.f32 %v299, %v301
    %v303 = vxor.u32 %v302, 2147483648
    %v304 = vmul.f32 %v303, 1.442695
    %v305 = vpow.pop %v304
    %v306 = vadd.f32 %v305, 1.0
    %v307 = vrcp.pop %v306
    %v308 = vmul.f32 1.0, %v307
    %v310 = vlaneseq
    %v311 = vand.u32 %v310, 127
    %v312 = vlaneseq
    %v313 = vshrl.u32 %v312, 7
    %v314 = vsub.s32 %v311, %v313
    %v315 = vrot.slane %v308, %v314
    %vm317 = vcmask 57344
    %318 = vst.msk [vmem:[#allocation9] sm:$0x1] %vm317, %v315
    // Predicated region
    $region38: #{tpu_custom_call.1} parent=1 // pred_check
      _
    $region39: #{tpu_custom_call.1} parent=1 // pred_check_branch
      %320 = sbr.rel (0) target = $region41
    $region40: #{tpu_custom_call.1} parent=1 // pred_region
      %s322 = ssub.s32 16, 16
      %323 = vsyncadd [#allocation5], %s322
      %s325 = sshll.u32 [#allocation9], 4
      %s326 = int_to_ptr.vmem [resolvable:$true] %s325
      %328 = dma.vmem_to_hbm [thread:$0]  %s326, 16, %s6, [#allocation5]
    $region41: #{tpu_custom_call.1} parent=1 // pred_fallthru
      _
    // Predicated region
    $region42: #{tpu_custom_call.1} parent=1 // pred_check
      _
    $region43: #{tpu_custom_call.1} parent=1 // pred_check_branch
      %330 = sbr.rel (0) target = $region45
    $region44: #{tpu_custom_call.1} parent=1 // pred_region
      %331 = dma.done [#allocation5], 16
    $region45: #{tpu_custom_call.1} parent=1 // pred_fallthru
      _
    %332 = vsyncpa [#allocation4], 1
    %333 = vsyncpa [#allocation7], 1
    %334 = vsyncpa [#allocation5], 1

</llo_original>
